<compile_context>
chip_gen: v7x
topology: tpu7x:2x2x1
jax: 0.10.0
libtpu: 0.0.40
codegen_flags: <defaults>
</compile_context>

<pallas_src>
import functools

import jax
import jax.numpy as jnp
from jax.experimental import pallas as pl
from jax.experimental.pallas import tpu as pltpu

MATMUL_DTYPE = jnp.bfloat16


def actor_critic_kernel(x_ref, w1_ref, b1_ref, w2_ref, b2_ref, out_ref, *,
                        num_actions: int):
    # In-kernel f32 -> bf16 cast of the activations (VPU cast hidden under the
    # MXU/DMA pipeline; avoids a separate wrapper-side XLA cast pass over x).
    x = x_ref[...].astype(w1_ref.dtype)

    # ---- fused first layer: [critic hidden | actor hidden] ------------------
    h = jnp.dot(x, w1_ref[...],
                preferred_element_type=jnp.float32) + b1_ref[...]      # (TB, 2H) f32
    h = jnp.maximum(h, 0.0)                                            # ReLU (f32 VPU, v5e-safe)

    # ---- fused second layer (block-diagonal packed heads) -------------------
    #   lane 0           -> critic value
    #   lanes 1..A       -> actor logits
    #   lanes A+1..OUT-1 -> zero padding (keeps the output store lane-dense)
    y = jnp.dot(h.astype(w2_ref.dtype), w2_ref[...],
                preferred_element_type=jnp.float32) + b2_ref[...]      # (TB, OUT) f32

    tb, out_lanes = out_ref.shape
    lane = jax.lax.broadcasted_iota(jnp.int32, (tb, out_lanes), 1)
    is_value = lane == 0
    is_action = jnp.logical_and(lane >= 1, lane <= num_actions)

    # ---- numerically-stable softmax over the action lanes only (f32) --------
    logits = jnp.where(is_action, y, jnp.float32(-1e30))
    m = jnp.max(logits, axis=1, keepdims=True)
    e = jnp.exp(logits - m)                      # masked lanes underflow to exactly 0
    denom = jnp.sum(e, axis=1, keepdims=True)
    policy = e * pl.reciprocal(denom, approx=True)   # EUP vrcp slot, otherwise idle

    # lane 0 = value, lanes 1..A = probabilities, zeros elsewhere; cast on store.
    out_ref[...] = jnp.where(is_value, y, policy).astype(out_ref.dtype)


def pack_params(params, matmul_dtype=MATMUL_DTYPE):
    """Pack the 4 Linear layers into 2 fused matmul operands.

    Returns (w1p, b1p, w2p, b2p):
      w1p: (D, 2H)   = [w1_critic | w1_actor]                 (matmul_dtype)
      b1p: (1, 2H)   = [b1_critic | b1_actor]                 (f32)
      w2p: (2H, OUT) block-diagonal: col 0 = critic head,
                     cols 1..A = actor head, rest 0; OUT=128k (matmul_dtype)
      b2p: (1, OUT)  matching packed bias                     (f32)
    """
    w1c, b1c, w2c, b2c, w1a, b1a, w2a, b2a = params
    D, H = w1c.shape
    A = w2a.shape[1]
    OUT = max(128, pl.cdiv(1 + A, 128) * 128)

    w1p = jnp.concatenate([w1c, w1a], axis=1).astype(matmul_dtype)
    b1p = jnp.concatenate([b1c, b1a], axis=1).astype(jnp.float32)

    w2p = jnp.zeros((2 * H, OUT), jnp.float32)
    w2p = w2p.at[:H, 0:1].set(w2c)
    w2p = w2p.at[H:, 1:1 + A].set(w2a)
    w2p = w2p.astype(matmul_dtype)

    b2p = jnp.zeros((1, OUT), jnp.float32)
    b2p = b2p.at[:, 0:1].set(b2c)
    b2p = b2p.at[:, 1:1 + A].set(b2a)
    return w1p, b1p, w2p, b2p


def _choose_batch_tiling(B, block_b):
    """Pad the batch to a multiple of 16 (bf16 sublane tile) and pick a batch
    tile TB that (a) amortizes the ~0.35us grid-step overhead (TB up to
    block_b) and (b) leaves >= 2 grid steps whenever possible so the
    "parallel" axis can be sharded across both v7x TensorCores."""
    B16 = max(16, pl.cdiv(B, 16) * 16)
    TB = max(16, (min(block_b, B16) // 16) * 16)
    Bp = pl.cdiv(B16, TB) * TB
    if Bp // TB == 1 and Bp >= 32:       # split a single step across 2 TCs
        TB = max(16, (Bp // 2 // 16) * 16)
        Bp = pl.cdiv(B16, TB) * TB
    return TB, Bp


def actor_critic_forward_packed(state, packed_params, num_actions, *,
                                block_b=512, out_dtype=jnp.bfloat16):
    """Runs the fused kernel and returns (packed_out, B) where packed_out has
    shape (Bp, 128): lane 0 = value, lanes 1..A = softmax policy, rest zeros.
    Keeping the packed layout downstream avoids two extra slice passes over HBM."""
    w1p, b1p, w2p, b2p = packed_params
    D, H2 = w1p.shape
    OUT = w2p.shape[1]

    x = state.reshape(-1, D)                       # state.view(-1, input_size); stays f32
    B = x.shape[0]
    TB, Bp = _choose_batch_tiling(B, block_b)
    if Bp != B:
        # TODO(synk): for large B, mask the tail tile in-kernel instead of a
        # separate jnp.pad HBM pass (only the last tile actually needs padding).
        x = jnp.pad(x, ((0, Bp - B), (0, 0)))

    kernel = functools.partial(actor_critic_kernel, num_actions=num_actions)

    out_bytes = jnp.dtype(out_dtype).itemsize
    cost = pl.CostEstimate(
        flops=2 * Bp * (D * H2 + H2 * OUT),
        transcendentals=Bp * OUT,
        bytes_accessed=(Bp * D * 4                       # x (f32)
                        + w1p.size * 2 + w2p.size * 2    # bf16 weights
                        + b1p.size * 4 + b2p.size * 4    # f32 biases
                        + Bp * OUT * out_bytes),         # packed output
    )

    out = pl.pallas_call(
        kernel,
        out_shape=jax.ShapeDtypeStruct((Bp, OUT), out_dtype),
        grid=(Bp // TB,),
        in_specs=[
            pl.BlockSpec((TB, D), lambda i: (i, 0)),        # x: tiled over batch
            pl.BlockSpec(w1p.shape, lambda i: (0, 0)),      # weights stay VMEM-resident
            pl.BlockSpec(b1p.shape, lambda i: (0, 0)),
            pl.BlockSpec(w2p.shape, lambda i: (0, 0)),
            pl.BlockSpec(b2p.shape, lambda i: (0, 0)),
        ],
        out_specs=pl.BlockSpec((TB, OUT), lambda i: (i, 0)),
        compiler_params=pltpu.CompilerParams(
            dimension_semantics=("parallel",)),             # shard batch across TCs
        cost_estimate=cost,
    )(x, w1p, b1p, w2p, b2p)
    return out, B


def actor_critic_forward(state, packed_params, num_actions, *,
                         block_b=512, out_dtype=jnp.bfloat16):
    """Convenience wrapper matching the PyTorch API: returns (value (B,1), policy (B,A)).
    Prefer actor_critic_forward_packed() if the consumer can use the packed layout."""
    out, B = actor_critic_forward_packed(state, packed_params, num_actions,
                                         block_b=block_b, out_dtype=out_dtype)
    value = out[:B, 0:1]
    policy = out[:B, 1:1 + num_actions]
    return value, policy


def init_params(key, input_size, hidden, num_actions):
    """Deterministic PyTorch-style uniform(-1/sqrt(fan_in), 1/sqrt(fan_in)) init.
    Weights are returned already transposed to (in, out)."""
    keys = jax.random.split(key, 8)

    def linear(kw, kb, fan_in, fan_out):
        bound = 1.0 / jnp.sqrt(jnp.float32(fan_in))
        w = jax.random.uniform(kw, (fan_in, fan_out), jnp.float32, -bound, bound)
        b = jax.random.uniform(kb, (1, fan_out), jnp.float32, -bound, bound)
        return w, b

    w1c, b1c = linear(keys[0], keys[1], input_size, hidden)
    w2c, b2c = linear(keys[2], keys[3], hidden, 1)
    w1a, b1a = linear(keys[4], keys[5], input_size, hidden)
    w2a, b2a = linear(keys[6], keys[7], hidden, num_actions)
    return (w1c, b1c, w2c, b2c, w1a, b1a, w2a, b2a)


def reference_forward(state, params, matmul_dtype=None):
    """Pure-JAX reference replicating the PyTorch forward exactly; optionally
    with the same low-precision-operand / f32-accumulation matmuls as the kernel."""
    w1c, b1c, w2c, b2c, w1a, b1a, w2a, b2a = params
    D = w1c.shape[0]
    x = state.reshape(-1, D)

    def mm(a, w):
        if matmul_dtype is not None:
            a = a.astype(matmul_dtype)
            w = w.astype(matmul_dtype)
        return jnp.dot(a, w, preferred_element_type=jnp.float32)

    h_c = jax.nn.relu(mm(x, w1c) + b1c)
    v = mm(h_c, w2c) + b2c
    h_a = jax.nn.relu(mm(x, w1a) + b1a)
    p = jax.nn.softmax(mm(h_a, w2a) + b2a, axis=1)
    return v, p


if __name__ == "__main__":
    # observation_space = (4, 16) -> input_size = 64 ; num_actions = (8,)
    B, OBS, HIDDEN, NUM_ACTIONS = 2, (4, 16), 256, 8
    input_size = 1
    for d in OBS:
        input_size *= d

    key = jax.random.PRNGKey(0)
    k_params, k_state = jax.random.split(key)
    params = init_params(k_params, input_size, HIDDEN, NUM_ACTIONS)
    packed = pack_params(params, matmul_dtype=MATMUL_DTYPE)
    state = jax.random.normal(k_state, (B,) + OBS, dtype=jnp.float32)

    value, policy = actor_critic_forward(state, packed, NUM_ACTIONS)
    value = jax.block_until_ready(value).astype(jnp.float32)
    policy = jax.block_until_ready(policy).astype(jnp.float32)

    assert value.shape == (B, 1) and policy.shape == (B, NUM_ACTIONS)

    # Tight check vs a reference using the same bf16-operand / f32-accum matmuls
    # (kernel additionally rounds its output to bf16 + uses an approx reciprocal,
    # hence 1e-2 tolerances).
    v_bf, p_bf = reference_forward(state, params, matmul_dtype=MATMUL_DTYPE)
    assert jnp.allclose(value, v_bf, atol=1e-2, rtol=1e-2)
    assert jnp.allclose(policy, p_bf, atol=1e-2, rtol=1e-2)

    # Loose check vs the exact f32 PyTorch-equivalent forward.
    v_f32, p_f32 = reference_forward(state, params)
    assert jnp.allclose(value, v_f32, atol=5e-2, rtol=5e-2)
    assert jnp.allclose(policy, p_f32, atol=5e-2, rtol=5e-2)

    # Softmax normalization (bf16 output + approx reciprocal -> relaxed tolerance).
    assert jnp.allclose(jnp.sum(policy, axis=1), 1.0, atol=2e-2)

    print("KERNEL_OK")
</pallas_src>

<mosaic_0001>
module attributes {stable_mosaic.version = 11 : i64} {
  func.func @actor_critic_kernel(%arg0: i32, %arg1: memref<16x64xf32, #tpu.memory_space<vmem>>, %arg2: memref<64x512xbf16, #tpu.memory_space<vmem>>, %arg3: memref<1x512xf32, #tpu.memory_space<vmem>>, %arg4: memref<512x128xbf16, #tpu.memory_space<vmem>>, %arg5: memref<1x128xf32, #tpu.memory_space<vmem>>, %arg6: memref<16x128xbf16, #tpu.memory_space<vmem>>) attributes {dimension_semantics = [#tpu.dimension_semantics<parallel>], iteration_bounds = array<i64: 1>, scalar_prefetch = 0 : i64, scratch_operands = 0 : i64, tpu.core_type = #tpu.core_type<tc>, window_params = [{transform_indices = @transform_0, window_bounds = array<i64: 16, 64>}, {pipeline_mode = #tpu.pipeline_mode<synchronous>, transform_indices = @transform_1, window_bounds = array<i64: 64, 512>}, {pipeline_mode = #tpu.pipeline_mode<synchronous>, transform_indices = @transform_2, window_bounds = array<i64: 1, 512>}, {pipeline_mode = #tpu.pipeline_mode<synchronous>, transform_indices = @transform_3, window_bounds = array<i64: 512, 128>}, {pipeline_mode = #tpu.pipeline_mode<synchronous>, transform_indices = @transform_4, window_bounds = array<i64: 1, 128>}, {transform_indices = @transform_5, window_bounds = array<i64: 16, 128>}]} {
    %c0 = arith.constant 0 : index
    %c0_0 = arith.constant 0 : index
    %0 = vector.load %arg1[%c0, %c0_0] : memref<16x64xf32, #tpu.memory_space<vmem>>, vector<16x64xf32>
    %1 = arith.truncf %0 : vector<16x64xf32> to vector<16x64xbf16>
    %c0_1 = arith.constant 0 : index
    %c0_2 = arith.constant 0 : index
    %2 = vector.load %arg2[%c0_1, %c0_2] : memref<64x512xbf16, #tpu.memory_space<vmem>>, vector<64x512xbf16>
    %cst = arith.constant dense<0.000000e+00> : vector<16x512xf32>
    %3 = tpu.matmul %1, %2, %cst {dimension_numbers = #tpu.dot_dimension_numbers<[1], [0], [0], [1], [0, 0, 1, 1], [], []>} : vector<16x64xbf16>, vector<64x512xbf16>, vector<16x512xf32> -> vector<16x512xf32>
    %c0_3 = arith.constant 0 : index
    %c0_4 = arith.constant 0 : index
    %4 = vector.load %arg3[%c0_3, %c0_4] : memref<1x512xf32, #tpu.memory_space<vmem>>, vector<1x512xf32>
    %5 = vector.broadcast %4 : vector<1x512xf32> to vector<16x512xf32>
    %6 = arith.addf %3, %5 : vector<16x512xf32>
    %cst_5 = arith.constant 0.000000e+00 : f32
    %7 = vector.broadcast %cst_5 : f32 to vector<16x512xf32>
    %8 = arith.maximumf %6, %7 : vector<16x512xf32>
    %9 = arith.truncf %8 : vector<16x512xf32> to vector<16x512xbf16>
    %c0_6 = arith.constant 0 : index
    %c0_7 = arith.constant 0 : index
    %10 = vector.load %arg4[%c0_6, %c0_7] : memref<512x128xbf16, #tpu.memory_space<vmem>>, vector<512x128xbf16>
    %cst_8 = arith.constant dense<0.000000e+00> : vector<16x128xf32>
    %11 = tpu.matmul %9, %10, %cst_8 {dimension_numbers = #tpu.dot_dimension_numbers<[1], [0], [0], [1], [0, 0, 1, 1], [], []>} : vector<16x512xbf16>, vector<512x128xbf16>, vector<16x128xf32> -> vector<16x128xf32>
    %c0_9 = arith.constant 0 : index
    %c0_10 = arith.constant 0 : index
    %12 = vector.load %arg5[%c0_9, %c0_10] : memref<1x128xf32, #tpu.memory_space<vmem>>, vector<1x128xf32>
    %13 = vector.broadcast %12 : vector<1x128xf32> to vector<16x128xf32>
    %14 = arith.addf %11, %13 : vector<16x128xf32>
    %15 = tpu.iota {dimensions = array<i32: 1>} : vector<16x128xi32>
    %c0_i32 = arith.constant 0 : i32
    %16 = vector.broadcast %c0_i32 : i32 to vector<16x128xi32>
    %17 = arith.cmpi eq, %15, %16 : vector<16x128xi32>
    %c1_i32 = arith.constant 1 : i32
    %18 = vector.broadcast %c1_i32 : i32 to vector<16x128xi32>
    %19 = arith.cmpi sge, %15, %18 : vector<16x128xi32>
    %c8_i32 = arith.constant 8 : i32
    %20 = vector.broadcast %c8_i32 : i32 to vector<16x128xi32>
    %21 = arith.cmpi sle, %15, %20 : vector<16x128xi32>
    %22 = arith.andi %19, %21 : vector<16x128xi1>
    %cst_11 = arith.constant -1.000000e+30 : f32
    %23 = vector.broadcast %cst_11 : f32 to vector<16x128xf32>
    %24 = arith.select %22, %14, %23 : vector<16x128xi1>, vector<16x128xf32>
    %cst_12 = arith.constant dense<0xFF800000> : vector<16xf32>
    %25 = vector.multi_reduction <maximumf>, %24, %cst_12 [1] : vector<16x128xf32> to vector<16xf32>
    %26 = vector.shape_cast %25 : vector<16xf32> to vector<16x1xf32>
    %27 = vector.broadcast %26 : vector<16x1xf32> to vector<16x128xf32>
    %28 = arith.subf %24, %27 : vector<16x128xf32>
    %29 = math.exp %28 : vector<16x128xf32>
    %cst_13 = arith.constant dense<0.000000e+00> : vector<16xf32>
    %30 = vector.multi_reduction <add>, %29, %cst_13 [1] : vector<16x128xf32> to vector<16xf32>
    %31 = vector.shape_cast %30 : vector<16xf32> to vector<16x1xf32>
    %32 = tpu.reciprocal %31 {approx = true} : vector<16x1xf32> -> vector<16x1xf32>
    %33 = vector.broadcast %32 : vector<16x1xf32> to vector<16x128xf32>
    %34 = arith.mulf %29, %33 : vector<16x128xf32>
    %35 = arith.select %17, %14, %34 : vector<16x128xi1>, vector<16x128xf32>
    %36 = arith.truncf %35 : vector<16x128xf32> to vector<16x128xbf16>
    %c0_14 = arith.constant 0 : index
    %c0_15 = arith.constant 0 : index
    %37 = vector.load %arg6[%c0_14, %c0_15] : memref<16x128xbf16, #tpu.memory_space<vmem>>, vector<16x128xbf16>
    tpu.vector_store %arg6[%c0_14, %c0_15], %36 {strides = array<i32>} : memref<16x128xbf16, #tpu.memory_space<vmem>>, vector<16x128xbf16>,
    return
  }
  func.func @transform_0(%arg0: i32) -> (i32, i32) {
    %c0_i32 = arith.constant 0 : i32
    %c0_i32_0 = arith.constant 0 : i32
    return %arg0, %c0_i32 : i32, i32
  }
  func.func @transform_1(%arg0: i32) -> (i32, i32) {
    %c0_i32 = arith.constant 0 : i32
    %c0_i32_0 = arith.constant 0 : i32
    %c0_i32_1 = arith.constant 0 : i32
    return %c0_i32, %c0_i32_0 : i32, i32
  }
  func.func @transform_2(%arg0: i32) -> (i32, i32) {
    %c0_i32 = arith.constant 0 : i32
    %c0_i32_0 = arith.constant 0 : i32
    %c0_i32_1 = arith.constant 0 : i32
    return %c0_i32, %c0_i32_0 : i32, i32
  }
  func.func @transform_3(%arg0: i32) -> (i32, i32) {
    %c0_i32 = arith.constant 0 : i32
    %c0_i32_0 = arith.constant 0 : i32
    %c0_i32_1 = arith.constant 0 : i32
    return %c0_i32, %c0_i32_0 : i32, i32
  }
  func.func @transform_4(%arg0: i32) -> (i32, i32) {
    %c0_i32 = arith.constant 0 : i32
    %c0_i32_0 = arith.constant 0 : i32
    %c0_i32_1 = arith.constant 0 : i32
    return %c0_i32, %c0_i32_0 : i32, i32
  }
  func.func @transform_5(%arg0: i32) -> (i32, i32) {
    %c0_i32 = arith.constant 0 : i32
    %c0_i32_0 = arith.constant 0 : i32
    return %arg0, %c0_i32 : i32, i32
  }
}

</mosaic_0001>

<llo_original>
// kernel: tpu_custom_call.1
$region0: #{tpu_custom_call.1}
  #allocation0 [shape = 'u32[]', space=smem, size = 0x4, offset = 0x4, fixed_abs, tag = 'smem constant byte address 0x4 - core index']
  #allocation1 [shape = 'u32[144,128]{1,0:T(1,128)}', space=vmem, size = 0x12000, scoped, tag = 'internal scratch']
  %s0 = inlined_call_operand.hbm [shape: f32[16,64], index: 0, kind: input, shape index: {}]
  %s1 = inlined_call_operand.hbm [shape: bf16[64,512], index: 1, kind: input, shape index: {}]
  %s2 = inlined_call_operand.vmem [shape: f32[1,512], index: 2, kind: input, shape index: {}]
  %s3 = inlined_call_operand.hbm [shape: bf16[512,128], index: 3, kind: input, shape index: {}]
  %s4 = inlined_call_operand.vmem [shape: f32[1,128], index: 4, kind: input, shape index: {}]
  %s5 = inlined_call_operand.hbm [shape: bf16[16,128], index: 5, kind: output, shape index: {}]
  %s6 = sld [smem:[#allocation0]]
  $region42: #{tpu_custom_call.1} parent=0
    _
  %s8 = ssub.s32 1, %s6
  %s9 = scalar_select 0, %s8, %s6
  $region1: #{tpu_custom_call.1} parent=0
    #allocation2 [shape = 'u8[8192]{0}', space=vmem, size = 0x2000, scoped, tag = 'input window, operand 0, single buffered']
    #allocation3 [shape = 's32[1]{0}', space=sflag, size = 0x4, scoped, tag = 'scoped memory for tpu_custom_call.1']
    #allocation4 [shape = 's32[1]{0}', space=sflag, size = 0x4, scoped, tag = 'scoped memory for tpu_custom_call.1']
    #allocation5 [shape = 'u8[65536]{0}', space=vmem, size = 0x10000, scoped, tag = 'input window, operand 1, single buffered']
    #allocation6 [shape = 's32[1]{0}', space=sflag, size = 0x4, scoped, tag = 'scoped memory for tpu_custom_call.1']
    #allocation7 [shape = 'u8[131072]{0}', space=vmem, size = 0x20000, scoped, tag = 'input window, operand 3, single buffered']
    #allocation8 [shape = 'u8[4096]{0}', space=vmem, size = 0x1000, scoped, tag = 'output window, operand 0, single buffered']
    %10 = vsyncpa [#allocation3], 0
    %11 = vsyncpa [#allocation6], 0
    %12 = vsyncpa [#allocation4], 0
    // Predicated region
    $region2: #{tpu_custom_call.1} parent=1 // pred_check
      _
    $region3: #{tpu_custom_call.1} parent=1 // pred_check_branch
      %14 = sbr.rel (0) target = $region5
    $region4: #{tpu_custom_call.1} parent=1 // pred_region
      %s16 = ssub.s32 256, 256
      %17 = vsyncadd [#allocation3], %s16
      %s18 = sshll.u32 [#allocation2], 4
      %s19 = int_to_ptr.vmem [resolvable:$true] %s18
      %24 = dma.hbm_to_vmem [thread:$0]  %s0, 256, %s19, [#allocation3], 128, 128, 8
    $region5: #{tpu_custom_call.1} parent=1 // pred_fallthru
      _
    // Predicated region
    $region6: #{tpu_custom_call.1} parent=1 // pred_check
      _
    $region7: #{tpu_custom_call.1} parent=1 // pred_check_branch
      %26 = sbr.rel (0) target = $region9
    $region8: #{tpu_custom_call.1} parent=1 // pred_region
      %s28 = ssub.s32 2048, 2048
      %29 = vsyncadd [#allocation6], %s28
      %s30 = sshll.u32 [#allocation5], 4
      %s31 = int_to_ptr.vmem [resolvable:$true] %s30
      %36 = dma.hbm_to_vmem [thread:$0]  %s1, 2048, %s31, [#allocation6], 256, 256, 16
    $region9: #{tpu_custom_call.1} parent=1 // pred_fallthru
      _
    // Predicated region
    $region10: #{tpu_custom_call.1} parent=1 // pred_check
      _
    $region11: #{tpu_custom_call.1} parent=1 // pred_check_branch
      %38 = sbr.rel (0) target = $region13
    $region12: #{tpu_custom_call.1} parent=1 // pred_region
      _
    $region13: #{tpu_custom_call.1} parent=1 // pred_fallthru
      _
    // Predicated region
    $region14: #{tpu_custom_call.1} parent=1 // pred_check
      _
    $region15: #{tpu_custom_call.1} parent=1 // pred_check_branch
      %40 = sbr.rel (0) target = $region17
    $region16: #{tpu_custom_call.1} parent=1 // pred_region
      %s42 = ssub.s32 4096, 4096
      %43 = vsyncadd [#allocation6], %s42
      %s44 = sshll.u32 [#allocation7], 4
      %s45 = int_to_ptr.vmem [resolvable:$true] %s44
      %50 = dma.hbm_to_vmem [thread:$0]  %s3, 4096, %s45, [#allocation6], 64, 64, 4
    $region17: #{tpu_custom_call.1} parent=1 // pred_fallthru
      _
    // Predicated region
    $region18: #{tpu_custom_call.1} parent=1 // pred_check
      _
    $region19: #{tpu_custom_call.1} parent=1 // pred_check_branch
      %52 = sbr.rel (0) target = $region21
    $region20: #{tpu_custom_call.1} parent=1 // pred_region
      _
    $region21: #{tpu_custom_call.1} parent=1 // pred_fallthru
      _
    // Predicated region
    $region22: #{tpu_custom_call.1} parent=1 // pred_check
      _
    $region23: #{tpu_custom_call.1} parent=1 // pred_check_branch
      %54 = sbr.rel (0) target = $region25
    $region24: #{tpu_custom_call.1} parent=1 // pred_region
      %55 = dma.done [#allocation3], 256
    $region25: #{tpu_custom_call.1} parent=1 // pred_fallthru
      _
    // Predicated region
    $region26: #{tpu_custom_call.1} parent=1 // pred_check
      _
    $region27: #{tpu_custom_call.1} parent=1 // pred_check_branch
      %57 = sbr.rel (0) target = $region29
    $region28: #{tpu_custom_call.1} parent=1 // pred_region
      %58 = dma.done [#allocation6], 2048
    $region29: #{tpu_custom_call.1} parent=1 // pred_fallthru
      _
    // Predicated region
    $region30: #{tpu_custom_call.1} parent=1 // pred_check
      _
    $region31: #{tpu_custom_call.1} parent=1 // pred_check_branch
      %60 = sbr.rel (0) target = $region33
    $region32: #{tpu_custom_call.1} parent=1 // pred_region
      %61 = dma.done [#allocation6], 4096
    $region33: #{tpu_custom_call.1} parent=1 // pred_fallthru
      _
    %v63 = vld [vmem:[#allocation2] sm:$0xff]
    %v64 = vld [vmem:[#allocation2 + $0x8] sm:$0xff]
    %v65 = vpack.c.bf16 %v64, %v63
    %v66 = vld [vmem:[#allocation5] sm:$0xff]
    %v67 = vld [vmem:[#allocation5 + $0x8] sm:$0xff]
    %v68 = vld [vmem:[#allocation5 + $0x10] sm:$0xff]
    %v69 = vld [vmem:[#allocation5 + $0x18] sm:$0xff]
    %v70 = vld [vmem:[#allocation5 + $0x20] sm:$0xff]
    %v71 = vld [vmem:[#allocation5 + $0x28] sm:$0xff]
    %v72 = vld [vmem:[#allocation5 + $0x30] sm:$0xff]
    %v73 = vld [vmem:[#allocation5 + $0x38] sm:$0xff]
    %v74 = vld [vmem:[#allocation5 + $0x40] sm:$0xff]
    %v75 = vld [vmem:[#allocation5 + $0x48] sm:$0xff]
    %v76 = vld [vmem:[#allocation5 + $0x50] sm:$0xff]
    %v77 = vld [vmem:[#allocation5 + $0x58] sm:$0xff]
    %v78 = vld [vmem:[#allocation5 + $0x60] sm:$0xff]
    %v79 = vld [vmem:[#allocation5 + $0x68] sm:$0xff]
    %v80 = vld [vmem:[#allocation5 + $0x70] sm:$0xff]
    %v81 = vld [vmem:[#allocation5 + $0x78] sm:$0xff]
    %v82 = vld [vmem:[%s2] sm:$0xf]
    %v84 = vlaneseq
    %v85 = vshrl.u32 %v84, 7
    %v86 = vsub.s32 0, %v85
    %v87 = vrot.slane %v82, %v86
    %v88 = vlaneseq
    %v89 = vshrl.u32 %v88, 7
    %v90 = vsub.s32 1, %v89
    %v91 = vrot.slane %v82, %v90
    %v92 = vlaneseq
    %v93 = vshrl.u32 %v92, 7
    %v94 = vsub.s32 2, %v93
    %v95 = vrot.slane %v82, %v94
    %v96 = vlaneseq
    %v97 = vshrl.u32 %v96, 7
    %v98 = vsub.s32 3, %v97
    %v99 = vrot.slane %v82, %v98
    %v120 = vunpack.c.l.b16 %v66
    %v121 = vunpack.c.h.b16 %v66
    %v122 = vunpack.c.l.b16 %v67
    %v123 = vunpack.c.h.b16 %v67
    %v124 = vunpack.c.l.b16 %v68
    %v125 = vunpack.c.h.b16 %v68
    %v126 = vunpack.c.l.b16 %v69
    %v127 = vunpack.c.h.b16 %v69
    %v128 = vunpack.c.l.b16 %v70
    %v129 = vunpack.c.h.b16 %v70
    %v130 = vunpack.c.l.b16 %v71
    %v131 = vunpack.c.h.b16 %v71
    %v132 = vunpack.c.l.b16 %v72
    %v133 = vunpack.c.h.b16 %v72
    %v134 = vunpack.c.l.b16 %v73
    %v135 = vunpack.c.h.b16 %v73
    %v136 = vunpack.c.l.b16 %v74
    %v137 = vunpack.c.h.b16 %v74
    %v138 = vunpack.c.l.b16 %v75
    %v139 = vunpack.c.h.b16 %v75
    %v140 = vunpack.c.l.b16 %v76
    %v141 = vunpack.c.h.b16 %v76
    %v142 = vunpack.c.l.b16 %v77
    %v143 = vunpack.c.h.b16 %v77
    %v144 = vunpack.c.l.b16 %v78
    %v145 = vunpack.c.h.b16 %v78
    %v146 = vunpack.c.l.b16 %v79
    %v147 = vunpack.c.h.b16 %v79
    %v148 = vunpack.c.l.b16 %v80
    %v149 = vunpack.c.h.b16 %v80
    %v150 = vunpack.c.l.b16 %v81
    %v151 = vunpack.c.h.b16 %v81
    %v152 = vpack.c.b16 %v124, %v120
    %v153 = vpack.c.b16 %v125, %v121
    %v154 = vpack.c.b16 %v126, %v122
    %v155 = vpack.c.b16 %v127, %v123
    %v156 = vpack.c.b16 %v132, %v128
    %v157 = vpack.c.b16 %v133, %v129
    %v158 = vpack.c.b16 %v134, %v130
    %v159 = vpack.c.b16 %v135, %v131
    %v160 = vpack.c.b16 %v140, %v136
    %v161 = vpack.c.b16 %v141, %v137
    %v162 = vpack.c.b16 %v142, %v138
    %v163 = vpack.c.b16 %v143, %v139
    %v164 = vpack.c.b16 %v148, %v144
    %v165 = vpack.c.b16 %v149, %v145
    %v166 = vpack.c.b16 %v150, %v146
    %v167 = vpack.c.b16 %v151, %v147
    %vm184 = vcmask 523264
    %v186 = vsel %vm184, %v65, 0
    %188 = vmatprep.subr.bf16.mxu0 %v153
    %189 = vmatpush1.bf16.msra.mxu0 %v152
    %190 = vmatprep.subr.bf16.mxu0 %v157
    %191 = vmatpush1.bf16.msra.mxu0 %v156
    %192 = vmatprep.subr.bf16.mxu0 %v161
    %193 = vmatpush1.bf16.msra.mxu0 %v160
    %194 = vmatprep.subr.bf16.mxu0 %v165
    %195 = vmatpush1.bf16.msra.mxu0 %v164
    %196 = vmatprep.subr.bf16.mxu0 0
    %197 = vmatpush1.bf16.msra.mxu0 0
    %198 = vmatprep.subr.bf16.mxu0 0
    %199 = vmatpush1.bf16.msra.mxu0 0
    %200 = vmatprep.subr.bf16.mxu0 0
    %201 = vmatpush1.bf16.msra.mxu0 0
    %202 = vmatprep.subr.bf16.mxu0 0
    %203 = vmatpush1.bf16.msra.mxu0 0
    %204 = vmatprep.subr.bf16.mxu0 0
    %205 = vmatpush1.bf16.msra.mxu0 0
    %206 = vmatprep.subr.bf16.mxu0 0
    %207 = vmatpush1.bf16.msra.mxu0 0
    %208 = vmatprep.subr.bf16.mxu0 0
    %209 = vmatpush1.bf16.msra.mxu0 0
    %210 = vmatprep.subr.bf16.mxu0 0
    %211 = vmatpush1.bf16.msra.mxu0 0
    %212 = vmatprep.subr.bf16.mxu0 0
    %213 = vmatpush1.bf16.msra.mxu0 0
    %214 = vmatprep.subr.bf16.mxu0 0
    %215 = vmatpush1.bf16.msra.mxu0 0
    %216 = vmatprep.subr.bf16.mxu0 0
    %217 = vmatpush1.bf16.msra.mxu0 0
    %218 = vmatprep.subr.bf16.mxu0 0
    %219 = vmatpush1.bf16.msra.mxu0 0
    %220 = vmatprep.mubr.bf16.mxu0 0
    %221 = vmatmul.mubr.bf16.gmra.mrb[0].mxu0 %v186
    %v222 = vpop.f32.mrb[0].mxu0
    %v223 = vadd.f32 %v87, %v222
    %v224 = vpop.f32.mrb[0].mxu0
    %v225 = vadd.f32 %v91, %v224
    %v226 = vpop.f32.mrb[0].mxu0
    %v227 = vadd.f32 %v87, %v226
    %v228 = vpop.f32.mrb[0].mxu0
    %v229 = vadd.f32 %v91, %v228
    %230 = vdwg.mxu0
    %231 = vmatprep.subr.bf16.mxu0 %v155
    %232 = vmatpush1.bf16.msra.mxu0 %v154
    %233 = vmatprep.subr.bf16.mxu0 %v159
    %234 = vmatpush1.bf16.msra.mxu0 %v158
    %235 = vmatprep.subr.bf16.mxu0 %v163
    %236 = vmatpush1.bf16.msra.mxu0 %v162
    %237 = vmatprep.subr.bf16.mxu0 %v167
    %238 = vmatpush1.bf16.msra.mxu0 %v166
    %239 = vmatprep.subr.bf16.mxu0 0
    %240 = vmatpush1.bf16.msra.mxu0 0
    %241 = vmatprep.subr.bf16.mxu0 0
    %242 = vmatpush1.bf16.msra.mxu0 0
    %243 = vmatprep.subr.bf16.mxu0 0
    %244 = vmatpush1.bf16.msra.mxu0 0
    %245 = vmatprep.subr.bf16.mxu0 0
    %246 = vmatpush1.bf16.msra.mxu0 0
    %247 = vmatprep.subr.bf16.mxu0 0
    %248 = vmatpush1.bf16.msra.mxu0 0
    %249 = vmatprep.subr.bf16.mxu0 0
    %250 = vmatpush1.bf16.msra.mxu0 0
    %251 = vmatprep.subr.bf16.mxu0 0
    %252 = vmatpush1.bf16.msra.mxu0 0
    %253 = vmatprep.subr.bf16.mxu0 0
    %254 = vmatpush1.bf16.msra.mxu0 0
    %255 = vmatprep.subr.bf16.mxu0 0
    %256 = vmatpush1.bf16.msra.mxu0 0
    %257 = vmatprep.subr.bf16.mxu0 0
    %258 = vmatpush1.bf16.msra.mxu0 0
    %259 = vmatprep.subr.bf16.mxu0 0
    %260 = vmatpush1.bf16.msra.mxu0 0
    %261 = vmatprep.subr.bf16.mxu0 0
    %262 = vmatpush1.bf16.msra.mxu0 0
    %263 = vmatprep.mubr.bf16.mxu0 0
    %264 = vmatmul.mubr.bf16.gmra.mrb[0].mxu0 %v186
    %v265 = vpop.f32.mrb[0].mxu0
    %v266 = vadd.f32 %v95, %v265
    %v267 = vpop.f32.mrb[0].mxu0
    %v268 = vadd.f32 %v99, %v267
    %v269 = vpop.f32.mrb[0].mxu0
    %v270 = vadd.f32 %v95, %v269
    %v271 = vpop.f32.mrb[0].mxu0
    %v272 = vadd.f32 %v99, %v271
    %273 = vdwg.mxu0
    %v274 = vmax.f32 %v223, 0.0
    %v275 = vmax.f32 %v225, 0.0
    %v276 = vmax.f32 %v266, 0.0
    %v277 = vmax.f32 %v268, 0.0
    %v278 = vmax.f32 %v227, 0.0
    %v279 = vmax.f32 %v229, 0.0
    %v280 = vmax.f32 %v270, 0.0
    %v281 = vmax.f32 %v272, 0.0
    %v282 = vpack.c.bf16 %v278, %v274
    %v283 = vpack.c.bf16 %v279, %v275
    %v284 = vpack.c.bf16 %v280, %v276
    %v285 = vpack.c.bf16 %v281, %v277
    %v286 = vld [vmem:[#allocation7] sm:$0xf]
    %v287 = vld [vmem:[#allocation7 + $0x4] sm:$0xf]
    %v288 = vld [vmem:[#allocation7 + $0x8] sm:$0xf]
    %v289 = vld [vmem:[#allocation7 + $0xc] sm:$0xf]
    %v290 = vld [vmem:[#allocation7 + $0x10] sm:$0xf]
    %v291 = vld [vmem:[#allocation7 + $0x14] sm:$0xf]
    %v292 = vld [vmem:[#allocation7 + $0x18] sm:$0xf]
    %v293 = vld [vmem:[#allocation7 + $0x1c] sm:$0xf]
    %v294 = vld [vmem:[#allocation7 + $0x20] sm:$0xf]
    %v295 = vld [vmem:[#allocation7 + $0x24] sm:$0xf]
    %v296 = vld [vmem:[#allocation7 + $0x28] sm:$0xf]
    %v297 = vld [vmem:[#allocation7 + $0x2c] sm:$0xf]
    %v298 = vld [vmem:[#allocation7 + $0x30] sm:$0xf]
    %v299 = vld [vmem:[#allocation7 + $0x34] sm:$0xf]
    %v300 = vld [vmem:[#allocation7 + $0x38] sm:$0xf]
    %v301 = vld [vmem:[#allocation7 + $0x3c] sm:$0xf]
    %v302 = vld [vmem:[#allocation7 + $0x40] sm:$0xf]
    %v303 = vld [vmem:[#allocation7 + $0x44] sm:$0xf]
    %v304 = vld [vmem:[#allocation7 + $0x48] sm:$0xf]
    %v305 = vld [vmem:[#allocation7 + $0x4c] sm:$0xf]
    %v306 = vld [vmem:[#allocation7 + $0x50] sm:$0xf]
    %v307 = vld [vmem:[#allocation7 + $0x54] sm:$0xf]
    %v308 = vld [vmem:[#allocation7 + $0x58] sm:$0xf]
    %v309 = vld [vmem:[#allocation7 + $0x5c] sm:$0xf]
    %v310 = vld [vmem:[#allocation7 + $0x60] sm:$0xf]
    %v311 = vld [vmem:[#allocation7 + $0x64] sm:$0xf]
    %v312 = vld [vmem:[#allocation7 + $0x68] sm:$0xf]
    %v313 = vld [vmem:[#allocation7 + $0x6c] sm:$0xf]
    %v314 = vld [vmem:[#allocation7 + $0x70] sm:$0xf]
    %v315 = vld [vmem:[#allocation7 + $0x74] sm:$0xf]
    %v316 = vld [vmem:[#allocation7 + $0x78] sm:$0xf]
    %v317 = vld [vmem:[#allocation7 + $0x7c] sm:$0xf]
    %v318 = vld [vmem:[#allocation7 + $0x80] sm:$0xf]
    %v319 = vld [vmem:[#allocation7 + $0x84] sm:$0xf]
    %v320 = vld [vmem:[#allocation7 + $0x88] sm:$0xf]
    %v321 = vld [vmem:[#allocation7 + $0x8c] sm:$0xf]
    %v322 = vld [vmem:[#allocation7 + $0x90] sm:$0xf]
    %v323 = vld [vmem:[#allocation7 + $0x94] sm:$0xf]
    %v324 = vld [vmem:[#allocation7 + $0x98] sm:$0xf]
    %v325 = vld [vmem:[#allocation7 + $0x9c] sm:$0xf]
    %v326 = vld [vmem:[#allocation7 + $0xa0] sm:$0xf]
    %v327 = vld [vmem:[#allocation7 + $0xa4] sm:$0xf]
    %v328 = vld [vmem:[#allocation7 + $0xa8] sm:$0xf]
    %v329 = vld [vmem:[#allocation7 + $0xac] sm:$0xf]
    %v330 = vld [vmem:[#allocation7 + $0xb0] sm:$0xf]
    %v331 = vld [vmem:[#allocation7 + $0xb4] sm:$0xf]
    %v332 = vld [vmem:[#allocation7 + $0xb8] sm:$0xf]
    %v333 = vld [vmem:[#allocation7 + $0xbc] sm:$0xf]
    %v334 = vld [vmem:[#allocation7 + $0xc0] sm:$0xf]
    %v335 = vld [vmem:[#allocation7 + $0xc4] sm:$0xf]
    %v336 = vld [vmem:[#allocation7 + $0xc8] sm:$0xf]
    %v337 = vld [vmem:[#allocation7 + $0xcc] sm:$0xf]
    %v338 = vld [vmem:[#allocation7 + $0xd0] sm:$0xf]
    %v339 = vld [vmem:[#allocation7 + $0xd4] sm:$0xf]
    %v340 = vld [vmem:[#allocation7 + $0xd8] sm:$0xf]
    %v341 = vld [vmem:[#allocation7 + $0xdc] sm:$0xf]
    %v342 = vld [vmem:[#allocation7 + $0xe0] sm:$0xf]
    %v343 = vld [vmem:[#allocation7 + $0xe4] sm:$0xf]
    %v344 = vld [vmem:[#allocation7 + $0xe8] sm:$0xf]
    %v345 = vld [vmem:[#allocation7 + $0xec] sm:$0xf]
    %v346 = vld [vmem:[#allocation7 + $0xf0] sm:$0xf]
    %v347 = vld [vmem:[#allocation7 + $0xf4] sm:$0xf]
    %v348 = vld [vmem:[#allocation7 + $0xf8] sm:$0xf]
    %v349 = vld [vmem:[#allocation7 + $0xfc] sm:$0xf]
    %v350 = vld [vmem:[%s4] sm:$0x1]
    %v352 = vlaneseq
    %v353 = vshrl.u32 %v352, 7
    %v354 = vsub.s32 0, %v353
    %v355 = vrot.slane %v350, %v354
    %v421 = vunpack.c.l.b16 %v286
    %v422 = vunpack.c.l.b16 %v287
    %v423 = vunpack.c.l.b16 %v288
    %v424 = vunpack.c.l.b16 %v289
    %v425 = vunpack.c.l.b16 %v290
    %v426 = vunpack.c.l.b16 %v291
    %v427 = vunpack.c.l.b16 %v292
    %v428 = vunpack.c.l.b16 %v293
    %v429 = vunpack.c.l.b16 %v294
    %v430 = vunpack.c.l.b16 %v295
    %v431 = vunpack.c.l.b16 %v296
    %v432 = vunpack.c.l.b16 %v297
    %v433 = vunpack.c.l.b16 %v298
    %v434 = vunpack.c.l.b16 %v299
    %v435 = vunpack.c.l.b16 %v300
    %v436 = vunpack.c.l.b16 %v301
    %v437 = vunpack.c.l.b16 %v302
    %v438 = vunpack.c.l.b16 %v303
    %v439 = vunpack.c.l.b16 %v304
    %v440 = vunpack.c.l.b16 %v305
    %v441 = vunpack.c.l.b16 %v306
    %v442 = vunpack.c.l.b16 %v307
    %v443 = vunpack.c.l.b16 %v308
    %v444 = vunpack.c.l.b16 %v309
    %v445 = vunpack.c.l.b16 %v310
    %v446 = vunpack.c.l.b16 %v311
    %v447 = vunpack.c.l.b16 %v312
    %v448 = vunpack.c.l.b16 %v313
    %v449 = vunpack.c.l.b16 %v314
    %v450 = vunpack.c.l.b16 %v315
    %v451 = vunpack.c.l.b16 %v316
    %v452 = vunpack.c.l.b16 %v317
    %v453 = vunpack.c.l.b16 %v318
    %v454 = vunpack.c.l.b16 %v319
    %v455 = vunpack.c.l.b16 %v320
    %v456 = vunpack.c.l.b16 %v321
    %v457 = vunpack.c.l.b16 %v322
    %v458 = vunpack.c.l.b16 %v323
    %v459 = vunpack.c.l.b16 %v324
    %v460 = vunpack.c.l.b16 %v325
    %v461 = vunpack.c.l.b16 %v326
    %v462 = vunpack.c.l.b16 %v327
    %v463 = vunpack.c.l.b16 %v328
    %v464 = vunpack.c.l.b16 %v329
    %v465 = vunpack.c.l.b16 %v330
    %v466 = vunpack.c.l.b16 %v331
    %v467 = vunpack.c.l.b16 %v332
    %v468 = vunpack.c.l.b16 %v333
    %v469 = vunpack.c.l.b16 %v334
    %v470 = vunpack.c.l.b16 %v335
    %v471 = vunpack.c.l.b16 %v336
    %v472 = vunpack.c.l.b16 %v337
    %v473 = vunpack.c.l.b16 %v338
    %v474 = vunpack.c.l.b16 %v339
    %v475 = vunpack.c.l.b16 %v340
    %v476 = vunpack.c.l.b16 %v341
    %v477 = vunpack.c.l.b16 %v342
    %v478 = vunpack.c.l.b16 %v343
    %v479 = vunpack.c.l.b16 %v344
    %v480 = vunpack.c.l.b16 %v345
    %v481 = vunpack.c.l.b16 %v346
    %v482 = vunpack.c.l.b16 %v347
    %v483 = vunpack.c.l.b16 %v348
    %v484 = vunpack.c.l.b16 %v349
    %v485 = vpack.c.b16 %v422, %v421
    %v486 = vpack.c.b16 %v424, %v423
    %v487 = vpack.c.b16 %v426, %v425
    %v488 = vpack.c.b16 %v428, %v427
    %v489 = vpack.c.b16 %v430, %v429
    %v490 = vpack.c.b16 %v432, %v431
    %v491 = vpack.c.b16 %v434, %v433
    %v492 = vpack.c.b16 %v436, %v435
    %v493 = vpack.c.b16 %v438, %v437
    %v494 = vpack.c.b16 %v440, %v439
    %v495 = vpack.c.b16 %v442, %v441
    %v496 = vpack.c.b16 %v444, %v443
    %v497 = vpack.c.b16 %v446, %v445
    %v498 = vpack.c.b16 %v448, %v447
    %v499 = vpack.c.b16 %v450, %v449
    %v500 = vpack.c.b16 %v452, %v451
    %v501 = vpack.c.b16 %v454, %v453
    %v502 = vpack.c.b16 %v456, %v455
    %v503 = vpack.c.b16 %v458, %v457
    %v504 = vpack.c.b16 %v460, %v459
    %v505 = vpack.c.b16 %v462, %v461
    %v506 = vpack.c.b16 %v464, %v463
    %v507 = vpack.c.b16 %v466, %v465
    %v508 = vpack.c.b16 %v468, %v467
    %v509 = vpack.c.b16 %v470, %v469
    %v510 = vpack.c.b16 %v472, %v471
    %v511 = vpack.c.b16 %v474, %v473
    %v512 = vpack.c.b16 %v476, %v475
    %v513 = vpack.c.b16 %v478, %v477
    %v514 = vpack.c.b16 %v480, %v479
    %v515 = vpack.c.b16 %v482, %v481
    %v516 = vpack.c.b16 %v484, %v483
    %549 = vmatprep.subr.bf16.mxu0 0
    %550 = vmatpush1.bf16.msra.mxu0 %v485
    %551 = vmatprep.subr.bf16.mxu0 0
    %552 = vmatpush1.bf16.msra.mxu0 %v486
    %553 = vmatprep.subr.bf16.mxu0 0
    %554 = vmatpush1.bf16.msra.mxu0 %v487
    %555 = vmatprep.subr.bf16.mxu0 0
    %556 = vmatpush1.bf16.msra.mxu0 %v488
    %557 = vmatprep.subr.bf16.mxu0 0
    %558 = vmatpush1.bf16.msra.mxu0 %v489
    %559 = vmatprep.subr.bf16.mxu0 0
    %560 = vmatpush1.bf16.msra.mxu0 %v490
    %561 = vmatprep.subr.bf16.mxu0 0
    %562 = vmatpush1.bf16.msra.mxu0 %v491
    %563 = vmatprep.subr.bf16.mxu0 0
    %564 = vmatpush1.bf16.msra.mxu0 %v492
    %565 = vmatprep.subr.bf16.mxu0 0
    %566 = vmatpush1.bf16.msra.mxu0 %v493
    %567 = vmatprep.subr.bf16.mxu0 0
    %568 = vmatpush1.bf16.msra.mxu0 %v494
    %569 = vmatprep.subr.bf16.mxu0 0
    %570 = vmatpush1.bf16.msra.mxu0 %v495
    %571 = vmatprep.subr.bf16.mxu0 0
    %572 = vmatpush1.bf16.msra.mxu0 %v496
    %573 = vmatprep.subr.bf16.mxu0 0
    %574 = vmatpush1.bf16.msra.mxu0 %v497
    %575 = vmatprep.subr.bf16.mxu0 0
    %576 = vmatpush1.bf16.msra.mxu0 %v498
    %577 = vmatprep.subr.bf16.mxu0 0
    %578 = vmatpush1.bf16.msra.mxu0 %v499
    %579 = vmatprep.subr.bf16.mxu0 0
    %580 = vmatpush1.bf16.msra.mxu0 %v500
    %581 = vmatprep.mubr.bf16.mxu0 %v283
    %582 = vmatmul.mubr.bf16.gmra.mrb[0].mxu0 %v282
    %v583 = vpop.f32.mrb[0].mxu0
    %v584 = vadd.f32 %v355, %v583
    %v585 = vpop.f32.mrb[0].mxu0
    %v586 = vpop.f32.mrb[0].mxu0
    %v587 = vadd.f32 %v355, %v586
    %v588 = vpop.f32.mrb[0].mxu0
    %589 = vdwg.mxu0
    %590 = vmatprep.subr.bf16.mxu0 0
    %591 = vmatpush1.bf16.msra.mxu0 %v501
    %592 = vmatprep.subr.bf16.mxu0 0
    %593 = vmatpush1.bf16.msra.mxu0 %v502
    %594 = vmatprep.subr.bf16.mxu0 0
    %595 = vmatpush1.bf16.msra.mxu0 %v503
    %596 = vmatprep.subr.bf16.mxu0 0
    %597 = vmatpush1.bf16.msra.mxu0 %v504
    %598 = vmatprep.subr.bf16.mxu0 0
    %599 = vmatpush1.bf16.msra.mxu0 %v505
    %600 = vmatprep.subr.bf16.mxu0 0
    %601 = vmatpush1.bf16.msra.mxu0 %v506
    %602 = vmatprep.subr.bf16.mxu0 0
    %603 = vmatpush1.bf16.msra.mxu0 %v507
    %604 = vmatprep.subr.bf16.mxu0 0
    %605 = vmatpush1.bf16.msra.mxu0 %v508
    %606 = vmatprep.subr.bf16.mxu0 0
    %607 = vmatpush1.bf16.msra.mxu0 %v509
    %608 = vmatprep.subr.bf16.mxu0 0
    %609 = vmatpush1.bf16.msra.mxu0 %v510
    %610 = vmatprep.subr.bf16.mxu0 0
    %611 = vmatpush1.bf16.msra.mxu0 %v511
    %612 = vmatprep.subr.bf16.mxu0 0
    %613 = vmatpush1.bf16.msra.mxu0 %v512
    %614 = vmatprep.subr.bf16.mxu0 0
    %615 = vmatpush1.bf16.msra.mxu0 %v513
    %616 = vmatprep.subr.bf16.mxu0 0
    %617 = vmatpush1.bf16.msra.mxu0 %v514
    %618 = vmatprep.subr.bf16.mxu0 0
    %619 = vmatpush1.bf16.msra.mxu0 %v515
    %620 = vmatprep.subr.bf16.mxu0 0
    %621 = vmatpush1.bf16.msra.mxu0 %v516
    %622 = vmatprep.mubr.bf16.mxu0 %v285
    %623 = vmatmul.mubr.bf16.gmra.mrb[0].mxu0 %v284
    %v624 = vpop.f32.mrb[0].mxu0
    %v625 = vadd.f32 %v584, %v624
    %v626 = vpop.f32.mrb[0].mxu0
    %v627 = vpop.f32.mrb[0].mxu0
    %v628 = vadd.f32 %v587, %v627
    %v629 = vpop.f32.mrb[0].mxu0
    %630 = vdwg.mxu0
    %v631 = vlaneseq
    %v632 = vand.u32 %v631, 127
    %vm633 = vcmp.eq.s32.totalorder %v632, 0
    %vm634 = vcmp.ge.s32.totalorder %v632, 1
    %vm635 = vcmp.le.s32.totalorder %v632, 8
    %vm636 = vmand %vm634, %vm635
    %v637 = vsel %vm636, %v625, -1e+30
    %v638 = vsel %vm636, %v628, -1e+30
    %639 = vmax.xlane.f32.xlu0 %v637
    %v640 = vpop.xlane.xlu0 %639
    %641 = vmax.xlane.f32.xlu0 %v638
    %v642 = vpop.xlane.xlu0 %641
    %v643 = vsub.f32 %v637, %v640
    %v644 = vsub.f32 %v638, %v642
    %v645 = vmul.f32 %v643, 1.442695
    %v646 = vpow.pop %v645
    %v647 = vmul.f32 %v644, 1.442695
    %v648 = vpow.pop %v647
    %649 = vadd.xlane.f32.xlu0 %v646
    %v650 = vpop.xlane.xlu0 %649
    %651 = vadd.xlane.f32.xlu0 %v648
    %v652 = vpop.xlane.xlu0 %651
    %v653 = vrcp.pop %v650
    %v654 = vrcp.pop %v652
    %v655 = vmul.f32 %v646, %v653
    %v656 = vmul.f32 %v648, %v654
    %v657 = vsel %vm633, %v625, %v655
    %v658 = vsel %vm633, %v628, %v656
    %v659 = vpack.c.bf16 %v658, %v657
    %v661 = vunpack.c.l.b16 %v659
    %v662 = vunpack.c.h.b16 %v659
    %v663 = vpack.c.b16 %v661, %v661
    %v664 = vpack.c.b16 %v662, %v662
    %667 = vst [vmem:[#allocation8] sm:$0xf] %v663
    %668 = vst [vmem:[#allocation8 + $0x4] sm:$0xf] %v664
    // Predicated region
    $region34: #{tpu_custom_call.1} parent=1 // pred_check
      _
    $region35: #{tpu_custom_call.1} parent=1 // pred_check_branch
      %670 = sbr.rel (0) target = $region37
    $region36: #{tpu_custom_call.1} parent=1 // pred_region
      %s672 = ssub.s32 128, 128
      %673 = vsyncadd [#allocation4], %s672
      %s674 = sshll.u32 [#allocation8], 4
      %s675 = int_to_ptr.vmem [resolvable:$true] %s674
      %680 = dma.vmem_to_hbm [thread:$0]  %s675, 128, %s5, [#allocation4], 64, 64, 4
    $region37: #{tpu_custom_call.1} parent=1 // pred_fallthru
      _
    // Predicated region
    $region38: #{tpu_custom_call.1} parent=1 // pred_check
      _
    $region39: #{tpu_custom_call.1} parent=1 // pred_check_branch
      %682 = sbr.rel (0) target = $region41
    $region40: #{tpu_custom_call.1} parent=1 // pred_region
      %683 = dma.done [#allocation4], 128
    $region41: #{tpu_custom_call.1} parent=1 // pred_fallthru
      _
    %684 = vsyncpa [#allocation3], 1
    %685 = vsyncpa [#allocation6], 1
    %686 = vsyncpa [#allocation4], 1

</llo_original>
